<compile_context>
chip_gen: v6e
topology: v6e:2x2x1
jax: 0.10.0
libtpu: 0.0.40
codegen_flags: <defaults>
</compile_context>

<pallas_src>
import functools
import math

import jax
import jax.numpy as jnp
from jax.experimental import pallas as pl
from jax.experimental.pallas import tpu as pltpu

IN_NC = 32     # condition channels  (SFTLayer in_nc)
OUT_NC = 64    # feature channels    (SFTLayer out_nc)
NF = 32        # hidden width        (SFTLayer nf)


# ----------------------------------------------------------------------------
# Pallas kernel: fused SFT layer over a (C, tile) block (C on sublanes,
# spatial positions on lanes).
# ----------------------------------------------------------------------------
def _sft_kernel(x0_ref, c_ref, w0_ref, b0_ref, w1_ref, b1_ref, o_ref):
    # First layer: both scale/shift conv0's packed into one (2*nf, in_nc) dot.
    c = c_ref[...]                                              # (in_nc, t)
    sh = jnp.dot(w0_ref[...], c, preferred_element_type=jnp.float32)
    sh = sh + b0_ref[...]                                       # (2*nf, t)
    sh = jnp.where(sh >= 0.0, sh, 0.1 * sh)                     # leaky_relu(0.1)

    # Second layer: block-diagonal (2*out_nc, 2*nf) weight -> (2*out_nc, t).
    # Row 0:out_nc = scale branch, row out_nc: = shift branch; the split falls
    # on a sublane/vreg boundary, so it is free (no lane shuffles).
    y = jnp.dot(w1_ref[...], sh.astype(w1_ref.dtype),
                preferred_element_type=jnp.float32)
    y = y + b1_ref[...]                                         # (2*out_nc, t)

    out_c = o_ref.shape[0]
    scale = y[:out_c]
    shift = y[out_c:]

    x0 = x0_ref[...].astype(jnp.float32)                        # elementwise in f32
    o_ref[...] = (x0 * (scale + 1.0) + shift).astype(o_ref.dtype)


# ----------------------------------------------------------------------------
# Wrappers
# ----------------------------------------------------------------------------
def _choose_lane_tile(HW, N, target):
    """Lane tile: multiple of 128, <= target, keeping >= 2 total grid blocks."""
    t = min(target, HW)
    t = max(128, (t // 128) * 128)
    while t > 128 and N * pl.cdiv(HW, t) < 2:   # both v7x TensorCores busy
        t = max(128, ((t // 2) // 128) * 128)
    return t


def sft_layer_chw(x0, x1, packed, tile=4096):
    """x0: (N, out_nc, HW), x1: (N, in_nc, HW) -> (N, out_nc, HW)."""
    N, C0, HW = x0.shape
    C1 = x1.shape[1]
    w0, b0, w1, b1 = packed["w0"], packed["b0"], packed["w1"], packed["b1"]

    t = _choose_lane_tile(HW, N, tile)
    HWp = pl.cdiv(HW, t) * t
    if HWp != HW:
        # TODO(synk): replace this pad/slice with an in-kernel masked store of
        # the final partial lane block; for HW % 128 == 0 shapes it never runs.
        x0 = jnp.pad(x0, ((0, 0), (0, 0), (0, HWp - HW)))
        x1 = jnp.pad(x1, ((0, 0), (0, 0), (0, HWp - HW)))

    def img(C):
        # (None, C, t): batch dim squeezed; kernel sees a lane-dense (C, t) tile.
        return pl.BlockSpec((None, C, t), lambda n, j: (n, 0, j))

    def full(a):
        return pl.BlockSpec(a.shape, lambda n, j: (0, 0))

    out = pl.pallas_call(
        _sft_kernel,
        out_shape=jax.ShapeDtypeStruct((N, C0, HWp), x0.dtype),
        grid_spec=pltpu.PrefetchScalarGridSpec(
            num_scalar_prefetch=0,
            grid=(N, HWp // t),
            in_specs=[img(C0), img(C1),
                      full(w0), full(b0), full(w1), full(b1)],
            out_specs=img(C0)),
        compiler_params=pltpu.CompilerParams(
            dimension_semantics=("parallel", "parallel"),
            vmem_limit_bytes=32 * 1024 * 1024),
    )(x0, x1, w0, b0, w1, b1)
    return out[:, :, :HW] if HWp != HW else out


def sft_layer(x0_nchw, x1_nchw, params, tile=4096):
    """PyTorch-style NCHW interface.  Returns x0 * (scale + 1) + shift."""
    N, C0, H, W = x0_nchw.shape
    C1 = x1_nchw.shape[1]
    x0 = x0_nchw.reshape(N, C0, H * W)     # free reshape (contiguous NCHW)
    x1 = x1_nchw.reshape(N, C1, H * W)
    out = sft_layer_chw(x0, x1, params, tile=tile)
    return out.reshape(N, C0, H, W)


# ----------------------------------------------------------------------------
# Parameters (deterministic, in-script) + pure-JAX reference
# ----------------------------------------------------------------------------
def init_params(key, in_nc=IN_NC, out_nc=OUT_NC, nf=NF):
    ks = jax.random.split(key, 8)

    def conv_w(k, cout, cin):
        return jax.random.normal(k, (cout, cin), jnp.float32) / math.sqrt(cin)

    def conv_b(k, cout, cin):
        bound = 1.0 / math.sqrt(cin)
        return jax.random.uniform(k, (cout,), jnp.float32,
                                  minval=-bound, maxval=bound)

    ws0, bs0 = conv_w(ks[0], nf, in_nc), conv_b(ks[1], nf, in_nc)
    ws1, bs1 = conv_w(ks[2], out_nc, nf), conv_b(ks[3], out_nc, nf)
    wh0, bh0 = conv_w(ks[4], nf, in_nc), conv_b(ks[5], nf, in_nc)
    wh1, bh1 = conv_w(ks[6], out_nc, nf), conv_b(ks[7], out_nc, nf)
    raw = dict(ws0=ws0, bs0=bs0, ws1=ws1, bs1=bs1,
               wh0=wh0, bh0=bh0, wh1=wh1, bh1=bh1)

    # Packed kernels for the fused Pallas kernel (channels-on-sublane layout):
    #   layer-0: concat scale|shift rows -> (2*nf, in_nc), single MXU dot
    #   layer-1: block-diagonal          -> (2*out_nc, 2*nf)
    w0 = jnp.concatenate([ws0, wh0], axis=0)                    # (2*nf, in_nc)
    b0 = jnp.concatenate([bs0, bh0]).reshape(2 * nf, 1)
    w1 = jnp.zeros((2 * out_nc, 2 * nf), jnp.float32)
    w1 = w1.at[:out_nc, :nf].set(ws1)
    w1 = w1.at[out_nc:, nf:].set(wh1)
    b1 = jnp.concatenate([bs1, bh1]).reshape(2 * out_nc, 1)
    packed = dict(w0=w0, b0=b0, w1=w1, b1=b1)
    return raw, packed


def sft_ref(x0_nchw, x1_nchw, raw):
    """Pure-JAX reference of the PyTorch SFTLayer forward (f32, high precision)."""
    def conv1x1(x, w, b):
        y = jnp.einsum("oc,nchw->nohw", w, x,
                       precision=jax.lax.Precision.HIGHEST)
        return y + b[None, :, None, None]

    s = conv1x1(x1_nchw, raw["ws0"], raw["bs0"])
    s = jnp.where(s >= 0.0, s, 0.1 * s)
    s = conv1x1(s, raw["ws1"], raw["bs1"])
    h = conv1x1(x1_nchw, raw["wh0"], raw["bh0"])
    h = jnp.where(h >= 0.0, h, 0.1 * h)
    h = conv1x1(h, raw["wh1"], raw["bh1"])
    return x0_nchw * (s + 1.0) + h


# ----------------------------------------------------------------------------
if __name__ == "__main__":
    key = jax.random.PRNGKey(0)
    kp, kx0, kx1 = jax.random.split(key, 3)
    raw, packed = init_params(kp)

    N, H, W = 2, 16, 16
    x0 = jax.random.normal(kx0, (N, OUT_NC, H, W), jnp.float32)
    x1 = jax.random.normal(kx1, (N, IN_NC, H, W), jnp.float32)

    fwd = jax.jit(functools.partial(sft_layer, params=packed))
    out = fwd(x0, x1)
    jax.block_until_ready(out)

    assert out.shape == (N, OUT_NC, H, W)
    assert out.dtype == jnp.float32

    ref = sft_ref(x0, x1, raw)
    rel_err = float(jnp.max(jnp.abs(out - ref)) /
                    (jnp.max(jnp.abs(ref)) + 1e-6))
    assert rel_err < 1e-2, f"numerical mismatch vs reference: {rel_err}"

    print("KERNEL_OK")
</pallas_src>

<mosaic_0001>
module attributes {stable_mosaic.version = 11 : i64} {
  func.func @_sft_kernel(%arg0: i32, %arg1: i32, %arg2: memref<1x64x256xf32, #tpu.memory_space<vmem>>, %arg3: memref<1x32x256xf32, #tpu.memory_space<vmem>>, %arg4: memref<64x32xf32, #tpu.memory_space<vmem>>, %arg5: memref<64x1xf32, #tpu.memory_space<vmem>>, %arg6: memref<128x64xf32, #tpu.memory_space<vmem>>, %arg7: memref<128x1xf32, #tpu.memory_space<vmem>>, %arg8: memref<1x64x256xf32, #tpu.memory_space<vmem>>) attributes {dimension_semantics = [#tpu.dimension_semantics<parallel>, #tpu.dimension_semantics<parallel>], iteration_bounds = array<i64: 2, 1>, scalar_prefetch = 0 : i64, scratch_operands = 0 : i64, tpu.core_type = #tpu.core_type<tc>, window_params = [{transform_indices = @transform_0, window_bounds = array<i64: 1, 64, 256>}, {transform_indices = @transform_1, window_bounds = array<i64: 1, 32, 256>}, {pipeline_mode = #tpu.pipeline_mode<synchronous>, transform_indices = @transform_2, window_bounds = array<i64: 64, 32>}, {pipeline_mode = #tpu.pipeline_mode<synchronous>, transform_indices = @transform_3, window_bounds = array<i64: 64, 1>}, {pipeline_mode = #tpu.pipeline_mode<synchronous>, transform_indices = @transform_4, window_bounds = array<i64: 128, 64>}, {pipeline_mode = #tpu.pipeline_mode<synchronous>, transform_indices = @transform_5, window_bounds = array<i64: 128, 1>}, {transform_indices = @transform_6, window_bounds = array<i64: 1, 64, 256>}]} {
    %c0 = arith.constant 0 : index
    %c0_0 = arith.constant 0 : index
    %c0_1 = arith.constant 0 : index
    %0 = vector.load %arg3[%c0, %c0_0, %c0_1] : memref<1x32x256xf32, #tpu.memory_space<vmem>>, vector<1x32x256xf32>
    %1 = vector.shape_cast %0 : vector<1x32x256xf32> to vector<32x256xf32>
    %c0_2 = arith.constant 0 : index
    %c0_3 = arith.constant 0 : index
    %2 = vector.load %arg4[%c0_2, %c0_3] : memref<64x32xf32, #tpu.memory_space<vmem>>, vector<64x32xf32>
    %cst = arith.constant dense<0.000000e+00> : vector<64x256xf32>
    %3 = tpu.matmul %2, %1, %cst {dimension_numbers = #tpu.dot_dimension_numbers<[1], [0], [0], [1], [0, 0, 1, 1], [], []>} : vector<64x32xf32>, vector<32x256xf32>, vector<64x256xf32> -> vector<64x256xf32>
    %c0_4 = arith.constant 0 : index
    %c0_5 = arith.constant 0 : index
    %4 = vector.load %arg5[%c0_4, %c0_5] : memref<64x1xf32, #tpu.memory_space<vmem>>, vector<64x1xf32>
    %5 = vector.broadcast %4 : vector<64x1xf32> to vector<64x256xf32>
    %6 = arith.addf %3, %5 : vector<64x256xf32>
    %cst_6 = arith.constant 0.000000e+00 : f32
    %7 = vector.broadcast %cst_6 : f32 to vector<64x256xf32>
    %8 = arith.cmpf oge, %6, %7 : vector<64x256xf32>
    %cst_7 = arith.constant 1.000000e-01 : f32
    %9 = vector.broadcast %cst_7 : f32 to vector<64x256xf32>
    %10 = arith.mulf %9, %6 : vector<64x256xf32>
    %11 = arith.select %8, %6, %10 : vector<64x256xi1>, vector<64x256xf32>
    %c0_8 = arith.constant 0 : index
    %c0_9 = arith.constant 0 : index
    %12 = vector.load %arg6[%c0_8, %c0_9] : memref<128x64xf32, #tpu.memory_space<vmem>>, vector<128x64xf32>
    %cst_10 = arith.constant dense<0.000000e+00> : vector<128x256xf32>
    %13 = tpu.matmul %12, %11, %cst_10 {dimension_numbers = #tpu.dot_dimension_numbers<[1], [0], [0], [1], [0, 0, 1, 1], [], []>} : vector<128x64xf32>, vector<64x256xf32>, vector<128x256xf32> -> vector<128x256xf32>
    %c0_11 = arith.constant 0 : index
    %c0_12 = arith.constant 0 : index
    %14 = vector.load %arg7[%c0_11, %c0_12] : memref<128x1xf32, #tpu.memory_space<vmem>>, vector<128x1xf32>
    %15 = vector.broadcast %14 : vector<128x1xf32> to vector<128x256xf32>
    %16 = arith.addf %13, %15 : vector<128x256xf32>
    %17 = vector.extract_strided_slice %16 {offsets = [0, 0], sizes = [64, 256], strides = [1, 1]} : vector<128x256xf32> to vector<64x256xf32>
    %18 = vector.extract_strided_slice %16 {offsets = [64, 0], sizes = [64, 256], strides = [1, 1]} : vector<128x256xf32> to vector<64x256xf32>
    %c0_13 = arith.constant 0 : index
    %c0_14 = arith.constant 0 : index
    %c0_15 = arith.constant 0 : index
    %19 = vector.load %arg2[%c0_13, %c0_14, %c0_15] : memref<1x64x256xf32, #tpu.memory_space<vmem>>, vector<1x64x256xf32>
    %20 = vector.shape_cast %19 : vector<1x64x256xf32> to vector<64x256xf32>
    %cst_16 = arith.constant 1.000000e+00 : f32
    %21 = vector.broadcast %cst_16 : f32 to vector<64x256xf32>
    %22 = arith.addf %17, %21 : vector<64x256xf32>
    %23 = arith.mulf %20, %22 : vector<64x256xf32>
    %24 = arith.addf %23, %18 : vector<64x256xf32>
    %c0_17 = arith.constant 0 : index
    %c0_18 = arith.constant 0 : index
    %c0_19 = arith.constant 0 : index
    %25 = vector.load %arg8[%c0_17, %c0_18, %c0_19] : memref<1x64x256xf32, #tpu.memory_space<vmem>>, vector<1x64x256xf32>
    %26 = vector.shape_cast %25 : vector<1x64x256xf32> to vector<64x256xf32>
    %27 = vector.shape_cast %24 : vector<64x256xf32> to vector<1x64x256xf32>
    tpu.vector_store %arg8[%c0_17, %c0_18, %c0_19], %27 {strides = array<i32>} : memref<1x64x256xf32, #tpu.memory_space<vmem>>, vector<1x64x256xf32>,
    return
  }
  func.func @transform_0(%arg0: i32, %arg1: i32) -> (i32, i32, i32) {
    %c0_i32 = arith.constant 0 : i32
    %c0_i32_0 = arith.constant 0 : i32
    return %arg0, %c0_i32, %arg1 : i32, i32, i32
  }
  func.func @transform_1(%arg0: i32, %arg1: i32) -> (i32, i32, i32) {
    %c0_i32 = arith.constant 0 : i32
    %c0_i32_0 = arith.constant 0 : i32
    return %arg0, %c0_i32, %arg1 : i32, i32, i32
  }
  func.func @transform_2(%arg0: i32, %arg1: i32) -> (i32, i32) {
    %c0_i32 = arith.constant 0 : i32
    %c0_i32_0 = arith.constant 0 : i32
    %c0_i32_1 = arith.constant 0 : i32
    return %c0_i32, %c0_i32_0 : i32, i32
  }
  func.func @transform_3(%arg0: i32, %arg1: i32) -> (i32, i32) {
    %c0_i32 = arith.constant 0 : i32
    %c0_i32_0 = arith.constant 0 : i32
    %c0_i32_1 = arith.constant 0 : i32
    return %c0_i32, %c0_i32_0 : i32, i32
  }
  func.func @transform_4(%arg0: i32, %arg1: i32) -> (i32, i32) {
    %c0_i32 = arith.constant 0 : i32
    %c0_i32_0 = arith.constant 0 : i32
    %c0_i32_1 = arith.constant 0 : i32
    return %c0_i32, %c0_i32_0 : i32, i32
  }
  func.func @transform_5(%arg0: i32, %arg1: i32) -> (i32, i32) {
    %c0_i32 = arith.constant 0 : i32
    %c0_i32_0 = arith.constant 0 : i32
    %c0_i32_1 = arith.constant 0 : i32
    return %c0_i32, %c0_i32_0 : i32, i32
  }
  func.func @transform_6(%arg0: i32, %arg1: i32) -> (i32, i32, i32) {
    %c0_i32 = arith.constant 0 : i32
    %c0_i32_0 = arith.constant 0 : i32
    return %arg0, %c0_i32, %arg1 : i32, i32, i32
  }
}

</mosaic_0001>

<llo_original>
// kernel: sft_layer.1
$region0: #{sft_layer.1}
  #allocation0 [shape = 'u32[]', space=smem, size = 0x4, offset = 0x4, fixed_abs, tag = 'smem constant byte address 0x4 - core index']
  #allocation1 [shape = 'u32[144,128]{1,0:T(1,128)}', space=vmem, size = 0x12000, scoped, tag = 'internal scratch']
  %s0 = inlined_call_operand.vmem [shape: f32[2,64,256], index: 0, kind: input, shape index: {}]
  %s1 = inlined_call_operand.vmem [shape: f32[2,32,256], index: 1, kind: input, shape index: {}]
  %s2 = inlined_call_operand.vmem [shape: f32[64,32], index: 2, kind: input, shape index: {}]
  %s3 = inlined_call_operand.vmem [shape: f32[64,1], index: 3, kind: input, shape index: {}]
  %s4 = inlined_call_operand.vmem [shape: f32[128,64], index: 4, kind: input, shape index: {}]
  %s5 = inlined_call_operand.vmem [shape: f32[128,1], index: 5, kind: input, shape index: {}]
  %s6 = inlined_call_operand.vmem [shape: f32[2,64,256], index: 6, kind: output, shape index: {}]
  %s7 = sld [smem:[#allocation0]]
  $region57: #{sft_layer.1} parent=0
    _
  %s9 = ssub.s32 1, %s7
  %s10 = scalar_select 0, %s9, %s7
  loop: start=0, step=1, limit=4
  $region2: #{sft_layer.1} parent=0 // loop_pre_header
    _
  $region3: #{sft_layer.1} parent=0 // loop_header
    %s12 = sphi 0, %s16
    %p13 = scmp.ge.s32.totalorder %s12, 4
    %s19 = sphi 0, %s31
    %s20 = sphi 0, %s27
    %s21 = sphi 0, %s19
    %s22 = sphi 0, %s20
    %s23 = sphi 0, %s21
    %s24 = sphi 0, %s22
    %s36 = sphi 0, %s38
    %s39 = sphi 0, %s36
    %s40 = sphi 0, %s39
    %s56 = sphi 0, %s40
    %s64 = sphi 0, %s66
    %s67 = sphi 0, %s64
    %s68 = sphi 0, %s67
    %s84 = sphi 0, %s68
    %s88 = sphi 0, %s88
    %s90 = sphi 0, %s88
    %s91 = sphi 0, %s90
    %s105 = sphi 0, %s91
    %s109 = sphi 0, %s109
    %s111 = sphi 0, %s109
    %s112 = sphi 0, %s111
    %s126 = sphi 0, %s112
    %s130 = sphi 0, %s130
    %s132 = sphi 0, %s130
    %s133 = sphi 0, %s132
    %s147 = sphi 0, %s133
    %s151 = sphi 0, %s151
    %s153 = sphi 0, %s151
    %s154 = sphi 0, %s153
    %s168 = sphi 0, %s154
    %s176 = sphi 0, %s178
    %s179 = sphi 0, %s176
    %s180 = sphi 0, %s179
    %s196 = sphi 0, %s180
  $region4: #{sft_layer.1} parent=0 // loop_header_branch
    %15 = sbr.rel (%p13) target = $region8
  $region5: #{sft_layer.1} parent=0 // loop_body
    %s17 = ssub.s32 %s12, 1
    %s18 = ssub.s32 %s12, 2
    %s25 = sadd.s32 1, %s20
    %p26 = scmp.ge.s32.totalorder %s25, 1
    %s27 = scalar_select %p26, 0, %s25
    %s28 = sadd.s32 1, %s19
    %s29 = scalar_select %p26, %s28, %s19
    %p30 = scmp.ge.s32.totalorder %s29, 2
    %s31 = scalar_select %p30, 0, %s29
    %s32 = ssub.s32 %s19, %s31
    %s33 = ssub.s32 %s20, %s27
    %s34 = sor.u32 %s32, %s33
    %p35 = scmp.eq.s32.totalorder %s34, 0
    %s37 = sadd.s32 %s36, 1
    %s38 = scalar_select %p35, %s36, %s37
    %p41 = pneg %p35
    %p42 = scmp.eq.s32.totalorder %s12, 1
    %p43 = por %p41, %p42
    %p44 = scmp.ne.s32.totalorder %s36, %s39
    %p45 = scmp.eq.s32.totalorder %s12, 0
    %p46 = por %p44, %p45
    %p47 = scmp.ne.s32.totalorder %s36, %s39
    %p48 = scmp.eq.s32.totalorder %s17, 1
    %p49 = por %p47, %p48
    %p50 = scmp.ne.s32.totalorder %s39, %s40
    %p51 = scmp.eq.s32.totalorder %s17, 0
    %p52 = por %p50, %p51
    %p53 = scmp.ne.s32.totalorder %s39, %s40
    %p54 = scmp.eq.s32.totalorder %s18, 1
    %p55 = por %p53, %p54
    %p57 = scmp.ne.s32.totalorder %s40, %s56
    %p58 = scmp.eq.s32.totalorder %s18, 0
    %p59 = por %p57, %p58
    %s60 = ssub.s32 %s19, %s31
    %s61 = ssub.s32 %s20, %s27
    %s62 = sor.u32 %s60, %s61
    %p63 = scmp.eq.s32.totalorder %s62, 0
    %s65 = sadd.s32 %s64, 1
    %s66 = scalar_select %p63, %s64, %s65
    %p69 = pneg %p63
    %p70 = scmp.eq.s32.totalorder %s12, 1
    %p71 = por %p69, %p70
    %p72 = scmp.ne.s32.totalorder %s64, %s67
    %p73 = scmp.eq.s32.totalorder %s12, 0
    %p74 = por %p72, %p73
    %p75 = scmp.ne.s32.totalorder %s64, %s67
    %p76 = scmp.eq.s32.totalorder %s17, 1
    %p77 = por %p75, %p76
    %p78 = scmp.ne.s32.totalorder %s67, %s68
    %p79 = scmp.eq.s32.totalorder %s17, 0
    %p80 = por %p78, %p79
    %p81 = scmp.ne.s32.totalorder %s67, %s68
    %p82 = scmp.eq.s32.totalorder %s18, 1
    %p83 = por %p81, %p82
    %p85 = scmp.ne.s32.totalorder %s68, %s84
    %p86 = scmp.eq.s32.totalorder %s18, 0
    %p87 = por %p85, %p86
    %s89 = sadd.s32 %s88, 1
    %p92 = scmp.eq.s32.totalorder %s12, 1
    %p93 = scmp.ne.s32.totalorder %s88, %s90
    %p94 = scmp.eq.s32.totalorder %s12, 0
    %p95 = por %p93, %p94
    %p96 = scmp.ne.s32.totalorder %s88, %s90
    %p97 = scmp.eq.s32.totalorder %s17, 1
    %p98 = por %p96, %p97
    %p99 = scmp.ne.s32.totalorder %s90, %s91
    %p100 = scmp.eq.s32.totalorder %s17, 0
    %p101 = por %p99, %p100
    %p102 = scmp.ne.s32.totalorder %s90, %s91
    %p103 = scmp.eq.s32.totalorder %s18, 1
    %p104 = por %p102, %p103
    %p106 = scmp.ne.s32.totalorder %s91, %s105
    %p107 = scmp.eq.s32.totalorder %s18, 0
    %p108 = por %p106, %p107
    %s110 = sadd.s32 %s109, 1
    %p113 = scmp.eq.s32.totalorder %s12, 1
    %p114 = scmp.ne.s32.totalorder %s109, %s111
    %p115 = scmp.eq.s32.totalorder %s12, 0
    %p116 = por %p114, %p115
    %p117 = scmp.ne.s32.totalorder %s109, %s111
    %p118 = scmp.eq.s32.totalorder %s17, 1
    %p119 = por %p117, %p118
    %p120 = scmp.ne.s32.totalorder %s111, %s112
    %p121 = scmp.eq.s32.totalorder %s17, 0
    %p122 = por %p120, %p121
    %p123 = scmp.ne.s32.totalorder %s111, %s112
    %p124 = scmp.eq.s32.totalorder %s18, 1
    %p125 = por %p123, %p124
    %p127 = scmp.ne.s32.totalorder %s112, %s126
    %p128 = scmp.eq.s32.totalorder %s18, 0
    %p129 = por %p127, %p128
    %s131 = sadd.s32 %s130, 1
    %p134 = scmp.eq.s32.totalorder %s12, 1
    %p135 = scmp.ne.s32.totalorder %s130, %s132
    %p136 = scmp.eq.s32.totalorder %s12, 0
    %p137 = por %p135, %p136
    %p138 = scmp.ne.s32.totalorder %s130, %s132
    %p139 = scmp.eq.s32.totalorder %s17, 1
    %p140 = por %p138, %p139
    %p141 = scmp.ne.s32.totalorder %s132, %s133
    %p142 = scmp.eq.s32.totalorder %s17, 0
    %p143 = por %p141, %p142
    %p144 = scmp.ne.s32.totalorder %s132, %s133
    %p145 = scmp.eq.s32.totalorder %s18, 1
    %p146 = por %p144, %p145
    %p148 = scmp.ne.s32.totalorder %s133, %s147
    %p149 = scmp.eq.s32.totalorder %s18, 0
    %p150 = por %p148, %p149
    %s152 = sadd.s32 %s151, 1
    %p155 = scmp.eq.s32.totalorder %s12, 1
    %p156 = scmp.ne.s32.totalorder %s151, %s153
    %p157 = scmp.eq.s32.totalorder %s12, 0
    %p158 = por %p156, %p157
    %p159 = scmp.ne.s32.totalorder %s151, %s153
    %p160 = scmp.eq.s32.totalorder %s17, 1
    %p161 = por %p159, %p160
    %p162 = scmp.ne.s32.totalorder %s153, %s154
    %p163 = scmp.eq.s32.totalorder %s17, 0
    %p164 = por %p162, %p163
    %p165 = scmp.ne.s32.totalorder %s153, %s154
    %p166 = scmp.eq.s32.totalorder %s18, 1
    %p167 = por %p165, %p166
    %p169 = scmp.ne.s32.totalorder %s154, %s168
    %p170 = scmp.eq.s32.totalorder %s18, 0
    %p171 = por %p169, %p170
    %s172 = ssub.s32 %s19, %s31
    %s173 = ssub.s32 %s20, %s27
    %s174 = sor.u32 %s172, %s173
    %p175 = scmp.eq.s32.totalorder %s174, 0
    %s177 = sadd.s32 %s176, 1
    %s178 = scalar_select %p175, %s176, %s177
    %p181 = pneg %p175
    %p182 = scmp.eq.s32.totalorder %s12, 1
    %p183 = por %p181, %p182
    %p184 = scmp.ne.s32.totalorder %s176, %s179
    %p185 = scmp.eq.s32.totalorder %s12, 0
    %p186 = por %p184, %p185
    %p187 = scmp.ne.s32.totalorder %s176, %s179
    %p188 = scmp.eq.s32.totalorder %s17, 1
    %p189 = por %p187, %p188
    %p190 = scmp.ne.s32.totalorder %s179, %s180
    %p191 = scmp.eq.s32.totalorder %s17, 0
    %p192 = por %p190, %p191
    %p193 = scmp.ne.s32.totalorder %s179, %s180
    %p194 = scmp.eq.s32.totalorder %s18, 1
    %p195 = por %p193, %p194
    %p197 = scmp.ne.s32.totalorder %s180, %s196
    %p198 = scmp.eq.s32.totalorder %s18, 0
    %p199 = por %p197, %p198
    %p200 = scmp.le.s32.totalorder 1, %s12
    %p201 = scmp.lt.s32.totalorder %s12, 3
    %p202 = pnand %p200, %p201
    %p203 = pneg %p202
    // Predicated region
    $region9: #{sft_layer.1} parent=5 // pred_check
      _
    $region10: #{sft_layer.1} parent=5 // pred_check_branch
      %205 = sbr.rel (%p202) target = $region12
    $region11: #{sft_layer.1} parent=5 // pred_region
      %s206 = ssub.s32 %s12, 1
      // Predicated region
      $region13: #{sft_layer.1} parent=11 // pred_check
        %p207 = pneg %p101
      $region14: #{sft_layer.1} parent=11 // pred_check_branch
        %209 = sbr.rel (%p207) target = $region16
      $region15: #{sft_layer.1} parent=11 // pred_region
        _
      $region16: #{sft_layer.1} parent=11 // pred_fallthru
        _
      // Predicated region
      $region17: #{sft_layer.1} parent=11 // pred_check
        %p210 = pneg %p122
      $region18: #{sft_layer.1} parent=11 // pred_check_branch
        %212 = sbr.rel (%p210) target = $region20
      $region19: #{sft_layer.1} parent=11 // pred_region
        _
      $region20: #{sft_layer.1} parent=11 // pred_fallthru
        _
      // Predicated region
      $region21: #{sft_layer.1} parent=11 // pred_check
        %p213 = pneg %p143
      $region22: #{sft_layer.1} parent=11 // pred_check_branch
        %215 = sbr.rel (%p213) target = $region24
      $region23: #{sft_layer.1} parent=11 // pred_region
        _
      $region24: #{sft_layer.1} parent=11 // pred_fallthru
        _
      // Predicated region
      $region25: #{sft_layer.1} parent=11 // pred_check
        %p216 = pneg %p164
      $region26: #{sft_layer.1} parent=11 // pred_check_branch
        %218 = sbr.rel (%p216) target = $region28
      $region27: #{sft_layer.1} parent=11 // pred_region
        _
      $region28: #{sft_layer.1} parent=11 // pred_fallthru
        _
    $region12: #{sft_layer.1} parent=5 // pred_fallthru
      _
    %p219 = scmp.lt.s32.totalorder %s12, 2
    // Predicated region
    $region29: #{sft_layer.1} parent=5 // pred_check
      %p220 = pneg %p219
    $region30: #{sft_layer.1} parent=5 // pred_check_branch
      %222 = sbr.rel (%p220) target = $region32
    $region31: #{sft_layer.1} parent=5 // pred_region
      // Predicated region
      $region33: #{sft_layer.1} parent=31 // pred_check
        %p223 = pneg %p46
      $region34: #{sft_layer.1} parent=31 // pred_check_branch
        %225 = sbr.rel (%p223) target = $region36
      $region35: #{sft_layer.1} parent=31 // pred_region
        %s226 = smul.u32 2, %s20
        %p227 = scmp.lt.s32.totalorder %s19, 1
        %s228 = scalar_select %p227, %s19, 1
        %p229 = scmp.lt.s32.totalorder %s226, 1
        %s230 = scalar_select %p229, %s226, 1
        %s231 = smul.addr %s228, 16
        %s232 = sadd.s32 %s230, %s231
        %s233 = smul.addr %s232, 8
        %s234 = scalar_lea.vmem %s0, %s233
        %s235 = smul.u32 2, %s20
      $region36: #{sft_layer.1} parent=31 // pred_fallthru
        _
      // Predicated region
      $region37: #{sft_layer.1} parent=31 // pred_check
        %p236 = pneg %p74
      $region38: #{sft_layer.1} parent=31 // pred_check_branch
        %238 = sbr.rel (%p236) target = $region40
      $region39: #{sft_layer.1} parent=31 // pred_region
        %s239 = smul.u32 2, %s20
        %p240 = scmp.lt.s32.totalorder %s19, 1
        %s241 = scalar_select %p240, %s19, 1
        %p242 = scmp.lt.s32.totalorder %s239, 1
        %s243 = scalar_select %p242, %s239, 1
        %s244 = smul.addr %s241, 8
        %s245 = sadd.s32 %s243, %s244
        %s246 = smul.addr %s245, 8
        %s247 = scalar_lea.vmem %s1, %s246
        %s248 = smul.u32 2, %s20
      $region40: #{sft_layer.1} parent=31 // pred_fallthru
        _
    $region32: #{sft_layer.1} parent=5 // pred_fallthru
      _
    %p249 = scmp.le.s32.totalorder 1, %s12
    %p250 = scmp.lt.s32.totalorder %s12, 3
    %p251 = pnand %p249, %p250
    %p252 = pneg %p251
    // Predicated region
    $region41: #{sft_layer.1} parent=5 // pred_check
      _
    $region42: #{sft_layer.1} parent=5 // pred_check_branch
      %254 = sbr.rel (%p251) target = $region44
    $region43: #{sft_layer.1} parent=5 // pred_region
      %s255 = ssub.s32 %s12, 1
      %s256 = smul.u32 2, %s22
      %p257 = scmp.lt.s32.totalorder %s21, 1
      %s258 = scalar_select %p257, %s21, 1
      %p259 = scmp.lt.s32.totalorder %s256, 1
      %s260 = scalar_select %p259, %s256, 1
      %s261 = smul.addr %s258, 16
      %s262 = sadd.s32 %s260, %s261
      %s263 = smul.addr %s262, 8
      %s264 = scalar_lea.vmem %s0, %s263
      %p265 = pneg %p52
      %p266 = pneg %p49
      %s267 = smul.u32 2, %s22
      %p268 = scmp.lt.s32.totalorder %s21, 1
      %s269 = scalar_select %p268, %s21, 1
      %p270 = scmp.lt.s32.totalorder %s267, 1
      %s271 = scalar_select %p270, %s267, 1
      %s272 = smul.addr %s269, 8
      %s273 = sadd.s32 %s271, %s272
      %s274 = smul.addr %s273, 8
      %s275 = scalar_lea.vmem %s1, %s274
      %p276 = pneg %p80
      %p277 = pneg %p77
      %p278 = pneg %p101
      %p279 = pneg %p98
      %p280 = pneg %p122
      %p281 = pneg %p119
      %p282 = pneg %p143
      %p283 = pneg %p140
      %p284 = pneg %p164
      %p285 = pneg %p161
      %p286 = pneg %p192
      %p287 = pneg %p189
      %s288 = smul.u32 2, %s22
      %p289 = scmp.lt.s32.totalorder %s21, 1
      %s290 = scalar_select %p289, %s21, 1
      %p291 = scmp.lt.s32.totalorder %s288, 1
      %s292 = scalar_select %p291, %s288, 1
      %s293 = smul.addr %s290, 16
      %s294 = sadd.s32 %s292, %s293
      %s295 = smul.addr %s294, 8
      %s296 = scalar_lea.vmem %s6, %s295
      %s297 = smul.u32 2, %s22
      %p298 = scmp.lt.s32.totalorder %s21, 1
      %s299 = scalar_select %p298, %s21, 1
      %p300 = scmp.lt.s32.totalorder %s297, 1
      %s301 = scalar_select %p300, %s297, 1
      %s302 = smul.addr %s299, 16
      %s303 = sadd.s32 %s301, %s302
      %s304 = smul.addr %s303, 8
      %s305 = scalar_lea.vmem %s0, %s304
      %s306 = smul.u32 2, %s22
      %s307 = smul.u32 2, %s22
      %p308 = scmp.lt.s32.totalorder %s21, 1
      %s309 = scalar_select %p308, %s21, 1
      %p310 = scmp.lt.s32.totalorder %s307, 1
      %s311 = scalar_select %p310, %s307, 1
      %s312 = smul.addr %s309, 8
      %s313 = sadd.s32 %s311, %s312
      %s314 = smul.addr %s313, 8
      %s315 = scalar_lea.vmem %s1, %s314
      %s316 = smul.u32 2, %s22
      %s317 = smul.u32 2, %s22
      %p318 = scmp.lt.s32.totalorder %s21, 1
      %s319 = scalar_select %p318, %s21, 1
      %p320 = scmp.lt.s32.totalorder %s317, 1
      %s321 = scalar_select %p320, %s317, 1
      %s322 = smul.addr %s319, 16
      %s323 = sadd.s32 %s321, %s322
      %s324 = smul.addr %s323, 8
      %s325 = scalar_lea.vmem %s6, %s324
      %s326 = smul.u32 2, %s22
      %v327 = vld [vmem:[%s315] sm:$0xff]
      %v328 = vld [vmem:[%s315 + $0x8] sm:$0xff]
      %v329 = vld [vmem:[%s315 + $0x10] sm:$0xff]
      %v330 = vld [vmem:[%s315 + $0x18] sm:$0xff]
      %v331 = vld [vmem:[%s315 + $0x20] sm:$0xff]
      %v332 = vld [vmem:[%s315 + $0x28] sm:$0xff]
      %v333 = vld [vmem:[%s315 + $0x30] sm:$0xff]
      %v334 = vld [vmem:[%s315 + $0x38] sm:$0xff]
      %v335 = vld [vmem:[%s2] sm:$0xff]
      %v336 = vld [vmem:[%s2 + $0x8] sm:$0xff]
      %v337 = vld [vmem:[%s2 + $0x10] sm:$0xff]
      %v338 = vld [vmem:[%s2 + $0x18] sm:$0xff]
      %v339 = vld [vmem:[%s2 + $0x20] sm:$0xff]
      %v340 = vld [vmem:[%s2 + $0x28] sm:$0xff]
      %v341 = vld [vmem:[%s2 + $0x30] sm:$0xff]
      %v342 = vld [vmem:[%s2 + $0x38] sm:$0xff]
      %v343 = vld [vmem:[%s3] sm:$0xff]
      %v344 = vld [vmem:[%s3 + $0x8] sm:$0xff]
      %v345 = vld [vmem:[%s3 + $0x10] sm:$0xff]
      %v346 = vld [vmem:[%s3 + $0x18] sm:$0xff]
      %v347 = vld [vmem:[%s3 + $0x20] sm:$0xff]
      %v348 = vld [vmem:[%s3 + $0x28] sm:$0xff]
      %v349 = vld [vmem:[%s3 + $0x30] sm:$0xff]
      %v350 = vld [vmem:[%s3 + $0x38] sm:$0xff]
      %352 = vset.pattern.permute.xlu0 0
      %353 = vperm.xlu0 %352, %v343
      %v354 = vpop.permute.xlu0 %353
      %357 = vset.pattern.permute.xlu0 0
      %358 = vperm.xlu0 %357, %v344
      %v359 = vpop.permute.xlu0 %358
      %362 = vset.pattern.permute.xlu0 0
      %363 = vperm.xlu0 %362, %v345
      %v364 = vpop.permute.xlu0 %363
      %367 = vset.pattern.permute.xlu0 0
      %368 = vperm.xlu0 %367, %v346
      %v369 = vpop.permute.xlu0 %368
      %372 = vset.pattern.permute.xlu0 0
      %373 = vperm.xlu0 %372, %v347
      %v374 = vpop.permute.xlu0 %373
      %377 = vset.pattern.permute.xlu0 0
      %378 = vperm.xlu0 %377, %v348
      %v379 = vpop.permute.xlu0 %378
      %382 = vset.pattern.permute.xlu0 0
      %383 = vperm.xlu0 %382, %v349
      %v384 = vpop.permute.xlu0 %383
      %387 = vset.pattern.permute.xlu0 0
      %388 = vperm.xlu0 %387, %v350
      %v389 = vpop.permute.xlu0 %388
      %vm391 = vcmask 261120
      %v393 = vsel %vm391, %v335, 0
      %v396 = vsel %vm391, %v336, 0
      %v399 = vsel %vm391, %v337, 0
      %v402 = vsel %vm391, %v338, 0
      %v405 = vsel %vm391, %v339, 0
      %v408 = vsel %vm391, %v340, 0
      %v411 = vsel %vm391, %v341, 0
      %v414 = vsel %vm391, %v342, 0
      %416 = vmatprep.subr.mxu0 0.0
      %417 = vmatpush1.msra.mxu0 0.0
      %418 = vmatprep.subr.mxu0 0.0
      %419 = vmatpush1.msra.mxu0 0.0
      %420 = vmatprep.subr.mxu0 0.0
      %421 = vmatpush1.msra.mxu0 0.0
      %422 = vmatprep.subr.mxu0 0.0
      %423 = vmatpush1.msra.mxu0 0.0
      %424 = vmatprep.subr.mxu0 0.0
      %425 = vmatpush1.msra.mxu0 0.0
      %426 = vmatprep.subr.mxu0 0.0
      %427 = vmatpush1.msra.mxu0 0.0
      %428 = vmatprep.subr.mxu0 0.0
      %429 = vmatpush1.msra.mxu0 0.0
      %430 = vmatprep.subr.mxu0 0.0
      %431 = vmatpush1.msra.mxu0 0.0
      %432 = vmatprep.subr.mxu0 0.0
      %433 = vmatpush1.msra.mxu0 0.0
      %434 = vmatprep.subr.mxu0 0.0
      %435 = vmatpush1.msra.mxu0 0.0
      %436 = vmatprep.subr.mxu0 0.0
      %437 = vmatpush1.msra.mxu0 0.0
      %438 = vmatprep.subr.mxu0 0.0
      %439 = vmatpush1.msra.mxu0 0.0
      %440 = vmatprep.subr.mxu0 %v334
      %441 = vmatpush1.msra.mxu0 %v333
      %442 = vmatprep.subr.mxu0 %v332
      %443 = vmatpush1.msra.mxu0 %v331
      %444 = vmatprep.subr.mxu0 %v330
      %445 = vmatpush1.msra.mxu0 %v329
      %446 = vmatprep.subr.mxu0 %v328
      %447 = vmatpush1.msra.mxu0 %v327
      %448 = vmatprep.subr.mxu0 0.0
      %449 = vmatpush2.msra.mxu0 0.0
      %450 = vmatprep.subr.mxu0 0.0
      %451 = vmatpush2.msra.mxu0 0.0
      %452 = vmatprep.subr.mxu0 0.0
      %453 = vmatpush2.msra.mxu0 0.0
      %454 = vmatprep.subr.mxu0 0.0
      %455 = vmatpush2.msra.mxu0 0.0
      %456 = vmatprep.subr.mxu0 0.0
      %457 = vmatpush2.msra.mxu0 0.0
      %458 = vmatprep.subr.mxu0 0.0
      %459 = vmatpush2.msra.mxu0 0.0
      %460 = vmatprep.subr.mxu0 0.0
      %461 = vmatpush2.msra.mxu0 0.0
      %462 = vmatprep.subr.mxu0 0.0
      %463 = vmatpush2.msra.mxu0 0.0
      %464 = vmatprep.subr.mxu0 0.0
      %465 = vmatpush2.msra.mxu0 0.0
      %466 = vmatprep.subr.mxu0 0.0
      %467 = vmatpush2.msra.mxu0 0.0
      %468 = vmatprep.subr.mxu0 0.0
      %469 = vmatpush2.msra.mxu0 0.0
      %470 = vmatprep.subr.mxu0 0.0
      %471 = vmatpush2.msra.mxu0 0.0
      %472 = vmatprep.subr.mxu0 0.0
      %473 = vmatpush2.msra.mxu0 0.0
      %474 = vmatprep.subr.mxu0 0.0
      %475 = vmatpush2.msra.mxu0 0.0
      %476 = vmatprep.subr.mxu0 0.0
      %477 = vmatpush2.msra.mxu0 0.0
      %478 = vmatprep.subr.mxu0 0.0
      %479 = vmatpush2.msra.mxu0 0.0
      %480 = vmatprep.mubr.f32.mxu0 0.0
      %481 = vmatmul.mubr.f32.gmra.mxu0 %v393
      %v482 = vpop.f32.mrf.mxu0
      %v483 = vadd.f32 %v354, %v482
      %v484 = vpop.f32.mrf.mxu0
      %v485 = vadd.f32 %v354, %v484
      %486 = vmatprep.mubr.f32.mxu0 0.0
      %487 = vmatmul.mubr.f32.gmra.mxu0 %v396
      %v488 = vpop.f32.mrf.mxu0
      %v489 = vadd.f32 %v359, %v488
      %v490 = vpop.f32.mrf.mxu0
      %v491 = vadd.f32 %v359, %v490
      %492 = vmatprep.mubr.f32.mxu0 0.0
      %493 = vmatmul.mubr.f32.gmra.mxu0 %v399
      %v494 = vpop.f32.mrf.mxu0
      %v495 = vadd.f32 %v364, %v494
      %v496 = vpop.f32.mrf.mxu0
      %v497 = vadd.f32 %v364, %v496
      %498 = vmatprep.mubr.f32.mxu0 0.0
      %499 = vmatmul.mubr.f32.gmra.mxu0 %v402
      %v500 = vpop.f32.mrf.mxu0
      %v501 = vadd.f32 %v369, %v500
      %v502 = vpop.f32.mrf.mxu0
      %v503 = vadd.f32 %v369, %v502
      %504 = vmatprep.mubr.f32.mxu0 0.0
      %505 = vmatmul.mubr.f32.gmra.mxu0 %v405
      %v506 = vpop.f32.mrf.mxu0
      %v507 = vadd.f32 %v374, %v506
      %v508 = vpop.f32.mrf.mxu0
      %v509 = vadd.f32 %v374, %v508
      %510 = vmatprep.mubr.f32.mxu0 0.0
      %511 = vmatmul.mubr.f32.gmra.mxu0 %v408
      %v512 = vpop.f32.mrf.mxu0
      %v513 = vadd.f32 %v379, %v512
      %v514 = vpop.f32.mrf.mxu0
      %v515 = vadd.f32 %v379, %v514
      %516 = vmatprep.mubr.f32.mxu0 0.0
      %517 = vmatmul.mubr.f32.gmra.mxu0 %v411
      %v518 = vpop.f32.mrf.mxu0
      %v519 = vadd.f32 %v384, %v518
      %v520 = vpop.f32.mrf.mxu0
      %v521 = vadd.f32 %v384, %v520
      %522 = vmatprep.mubr.f32.mxu0 0.0
      %523 = vmatmul.mubr.f32.gmra.mxu0 %v414
      %v524 = vpop.f32.mrf.mxu0
      %v525 = vadd.f32 %v389, %v524
      %v526 = vpop.f32.mrf.mxu0
      %v527 = vadd.f32 %v389, %v526
      %528 = vdwg.mxu0
      %vm529 = vcmp.ge.f32.partialorder %v483, 0.0
      %vm530 = vcmp.ge.f32.partialorder %v485, 0.0
      %vm531 = vcmp.ge.f32.partialorder %v489, 0.0
      %vm532 = vcmp.ge.f32.partialorder %v491, 0.0
      %vm533 = vcmp.ge.f32.partialorder %v495, 0.0
      %vm534 = vcmp.ge.f32.partialorder %v497, 0.0
      %vm535 = vcmp.ge.f32.partialorder %v501, 0.0
      %vm536 = vcmp.ge.f32.partialorder %v503, 0.0
      %vm537 = vcmp.ge.f32.partialorder %v507, 0.0
      %vm538 = vcmp.ge.f32.partialorder %v509, 0.0
      %vm539 = vcmp.ge.f32.partialorder %v513, 0.0
      %vm540 = vcmp.ge.f32.partialorder %v515, 0.0
      %vm541 = vcmp.ge.f32.partialorder %v519, 0.0
      %vm542 = vcmp.ge.f32.partialorder %v521, 0.0
      %vm543 = vcmp.ge.f32.partialorder %v525, 0.0
      %vm544 = vcmp.ge.f32.partialorder %v527, 0.0
      %v545 = vmul.f32 %v483, 0.1
      %v546 = vmul.f32 %v485, 0.1
      %v547 = vmul.f32 %v489, 0.1
      %v548 = vmul.f32 %v491, 0.1
      %v549 = vmul.f32 %v495, 0.1
      %v550 = vmul.f32 %v497, 0.1
      %v551 = vmul.f32 %v501, 0.1
      %v552 = vmul.f32 %v503, 0.1
      %v553 = vmul.f32 %v507, 0.1
      %v554 = vmul.f32 %v509, 0.1
      %v555 = vmul.f32 %v513, 0.1
      %v556 = vmul.f32 %v515, 0.1
      %v557 = vmul.f32 %v519, 0.1
      %v558 = vmul.f32 %v521, 0.1
      %v559 = vmul.f32 %v525, 0.1
      %v560 = vmul.f32 %v527, 0.1
      %v561 = vsel %vm529, %v483, %v545
      %v562 = vsel %vm530, %v485, %v546
      %v563 = vsel %vm531, %v489, %v547
      %v564 = vsel %vm532, %v491, %v548
      %v565 = vsel %vm533, %v495, %v549
      %v566 = vsel %vm534, %v497, %v550
      %v567 = vsel %vm535, %v501, %v551
      %v568 = vsel %vm536, %v503, %v552
      %v569 = vsel %vm537, %v507, %v553
      %v570 = vsel %vm538, %v509, %v554
      %v571 = vsel %vm539, %v513, %v555
      %v572 = vsel %vm540, %v515, %v556
      %v573 = vsel %vm541, %v519, %v557
      %v574 = vsel %vm542, %v521, %v558
      %v575 = vsel %vm543, %v525, %v559
      %v576 = vsel %vm544, %v527, %v560
      %v577 = vld [vmem:[%s4] sm:$0xff]
      %v578 = vld [vmem:[%s4 + $0x8] sm:$0xff]
      %v579 = vld [vmem:[%s4 + $0x10] sm:$0xff]
      %v580 = vld [vmem:[%s4 + $0x18] sm:$0xff]
      %v581 = vld [vmem:[%s4 + $0x20] sm:$0xff]
      %v582 = vld [vmem:[%s4 + $0x28] sm:$0xff]
      %v583 = vld [vmem:[%s4 + $0x30] sm:$0xff]
      %v584 = vld [vmem:[%s4 + $0x38] sm:$0xff]
      %v585 = vld [vmem:[%s4 + $0x40] sm:$0xff]
      %v586 = vld [vmem:[%s4 + $0x48] sm:$0xff]
      %v587 = vld [vmem:[%s4 + $0x50] sm:$0xff]
      %v588 = vld [vmem:[%s4 + $0x58] sm:$0xff]
      %v589 = vld [vmem:[%s4 + $0x60] sm:$0xff]
      %v590 = vld [vmem:[%s4 + $0x68] sm:$0xff]
      %v591 = vld [vmem:[%s4 + $0x70] sm:$0xff]
      %v592 = vld [vmem:[%s4 + $0x78] sm:$0xff]
      %v593 = vld [vmem:[%s5] sm:$0xff]
      %v594 = vld [vmem:[%s5 + $0x8] sm:$0xff]
      %v595 = vld [vmem:[%s5 + $0x10] sm:$0xff]
      %v596 = vld [vmem:[%s5 + $0x18] sm:$0xff]
      %v597 = vld [vmem:[%s5 + $0x20] sm:$0xff]
      %v598 = vld [vmem:[%s5 + $0x28] sm:$0xff]
      %v599 = vld [vmem:[%s5 + $0x30] sm:$0xff]
      %v600 = vld [vmem:[%s5 + $0x38] sm:$0xff]
      %v601 = vld [vmem:[%s5 + $0x40] sm:$0xff]
      %v602 = vld [vmem:[%s5 + $0x48] sm:$0xff]
      %v603 = vld [vmem:[%s5 + $0x50] sm:$0xff]
      %v604 = vld [vmem:[%s5 + $0x58] sm:$0xff]
      %v605 = vld [vmem:[%s5 + $0x60] sm:$0xff]
      %v606 = vld [vmem:[%s5 + $0x68] sm:$0xff]
      %v607 = vld [vmem:[%s5 + $0x70] sm:$0xff]
      %v608 = vld [vmem:[%s5 + $0x78] sm:$0xff]
      %610 = vset.pattern.permute.xlu0 0
      %611 = vperm.xlu0 %610, %v593
      %v612 = vpop.permute.xlu0 %611
      %615 = vset.pattern.permute.xlu0 0
      %616 = vperm.xlu0 %615, %v594
      %v617 = vpop.permute.xlu0 %616
      %620 = vset.pattern.permute.xlu0 0
      %621 = vperm.xlu0 %620, %v595
      %v622 = vpop.permute.xlu0 %621
      %625 = vset.pattern.permute.xlu0 0
      %626 = vperm.xlu0 %625, %v596
      %v627 = vpop.permute.xlu0 %626
      %630 = vset.pattern.permute.xlu0 0
      %631 = vperm.xlu0 %630, %v597
      %v632 = vpop.permute.xlu0 %631
      %635 = vset.pattern.permute.xlu0 0
      %636 = vperm.xlu0 %635, %v598
      %v637 = vpop.permute.xlu0 %636
      %640 = vset.pattern.permute.xlu0 0
      %641 = vperm.xlu0 %640, %v599
      %v642 = vpop.permute.xlu0 %641
      %645 = vset.pattern.permute.xlu0 0
      %646 = vperm.xlu0 %645, %v600
      %v647 = vpop.permute.xlu0 %646
      %650 = vset.pattern.permute.xlu0 0
      %651 = vperm.xlu0 %650, %v601
      %v652 = vpop.permute.xlu0 %651
      %655 = vset.pattern.permute.xlu0 0
      %656 = vperm.xlu0 %655, %v602
      %v657 = vpop.permute.xlu0 %656
      %660 = vset.pattern.permute.xlu0 0
      %661 = vperm.xlu0 %660, %v603
      %v662 = vpop.permute.xlu0 %661
      %665 = vset.pattern.permute.xlu0 0
      %666 = vperm.xlu0 %665, %v604
      %v667 = vpop.permute.xlu0 %666
      %670 = vset.pattern.permute.xlu0 0
      %671 = vperm.xlu0 %670, %v605
      %v672 = vpop.permute.xlu0 %671
      %675 = vset.pattern.permute.xlu0 0
      %676 = vperm.xlu0 %675, %v606
      %v677 = vpop.permute.xlu0 %676
      %680 = vset.pattern.permute.xlu0 0
      %681 = vperm.xlu0 %680, %v607
      %v682 = vpop.permute.xlu0 %681
      %685 = vset.pattern.permute.xlu0 0
      %686 = vperm.xlu0 %685, %v608
      %v687 = vpop.permute.xlu0 %686
      %vm689 = vcmask 523264
      %v691 = vsel %vm689, %v577, 0
      %v694 = vsel %vm689, %v578, 0
      %v697 = vsel %vm689, %v579, 0
      %v700 = vsel %vm689, %v580, 0
      %v703 = vsel %vm689, %v581, 0
      %v706 = vsel %vm689, %v582, 0
      %v709 = vsel %vm689, %v583, 0
      %v712 = vsel %vm689, %v584, 0
      %v715 = vsel %vm689, %v585, 0
      %v718 = vsel %vm689, %v586, 0
      %v721 = vsel %vm689, %v587, 0
      %v724 = vsel %vm689, %v588, 0
      %v727 = vsel %vm689, %v589, 0
      %v730 = vsel %vm689, %v590, 0
      %v733 = vsel %vm689, %v591, 0
      %v736 = vsel %vm689, %v592, 0
      %738 = vmatprep.subr.mxu0 0.0
      %739 = vmatpush1.msra.mxu0 0.0
      %740 = vmatprep.subr.mxu0 0.0
      %741 = vmatpush1.msra.mxu0 0.0
      %742 = vmatprep.subr.mxu0 0.0
      %743 = vmatpush1.msra.mxu0 0.0
      %744 = vmatprep.subr.mxu0 0.0
      %745 = vmatpush1.msra.mxu0 0.0
      %746 = vmatprep.subr.mxu0 0.0
      %747 = vmatpush1.msra.mxu0 0.0
      %748 = vmatprep.subr.mxu0 0.0
      %749 = vmatpush1.msra.mxu0 0.0
      %750 = vmatprep.subr.mxu0 0.0
      %751 = vmatpush1.msra.mxu0 0.0
      %752 = vmatprep.subr.mxu0 0.0
      %753 = vmatpush1.msra.mxu0 0.0
      %754 = vmatprep.subr.mxu0 %v576
      %755 = vmatpush1.msra.mxu0 %v575
      %756 = vmatprep.subr.mxu0 %v574
      %757 = vmatpush1.msra.mxu0 %v573
      %758 = vmatprep.subr.mxu0 %v572
      %759 = vmatpush1.msra.mxu0 %v571
      %760 = vmatprep.subr.mxu0 %v570
      %761 = vmatpush1.msra.mxu0 %v569
      %762 = vmatprep.subr.mxu0 %v568
      %763 = vmatpush1.msra.mxu0 %v567
      %764 = vmatprep.subr.mxu0 %v566
      %765 = vmatpush1.msra.mxu0 %v565
      %766 = vmatprep.subr.mxu0 %v564
      %767 = vmatpush1.msra.mxu0 %v563
      %768 = vmatprep.subr.mxu0 %v562
      %769 = vmatpush1.msra.mxu0 %v561
      %770 = vmatprep.subr.mxu0 0.0
      %771 = vmatpush2.msra.mxu0 0.0
      %772 = vmatprep.subr.mxu0 0.0
      %773 = vmatpush2.msra.mxu0 0.0
      %774 = vmatprep.subr.mxu0 0.0
      %775 = vmatpush2.msra.mxu0 0.0
      %776 = vmatprep.subr.mxu0 0.0
      %777 = vmatpush2.msra.mxu0 0.0
      %778 = vmatprep.subr.mxu0 0.0
      %779 = vmatpush2.msra.mxu0 0.0
      %780 = vmatprep.subr.mxu0 0.0
      %781 = vmatpush2.msra.mxu0 0.0
      %782 = vmatprep.subr.mxu0 0.0
      %783 = vmatpush2.msra.mxu0 0.0
      %784 = vmatprep.subr.mxu0 0.0
      %785 = vmatpush2.msra.mxu0 0.0
      %786 = vmatprep.subr.mxu0 0.0
      %787 = vmatpush2.msra.mxu0 0.0
      %788 = vmatprep.subr.mxu0 0.0
      %789 = vmatpush2.msra.mxu0 0.0
      %790 = vmatprep.subr.mxu0 0.0
      %791 = vmatpush2.msra.mxu0 0.0
      %792 = vmatprep.subr.mxu0 0.0
      %793 = vmatpush2.msra.mxu0 0.0
      %794 = vmatprep.subr.mxu0 0.0
      %795 = vmatpush2.msra.mxu0 0.0
      %796 = vmatprep.subr.mxu0 0.0
      %797 = vmatpush2.msra.mxu0 0.0
      %798 = vmatprep.subr.mxu0 0.0
      %799 = vmatpush2.msra.mxu0 0.0
      %800 = vmatprep.subr.mxu0 0.0
      %801 = vmatpush2.msra.mxu0 0.0
      %802 = vmatprep.mubr.f32.mxu0 0.0
      %803 = vmatmul.mubr.f32.gmra.mxu0 %v691
      %v804 = vpop.f32.mrf.mxu0
      %v805 = vadd.f32 %v612, %v804
      %v806 = vpop.f32.mrf.mxu0
      %v807 = vadd.f32 %v612, %v806
      %808 = vmatprep.mubr.f32.mxu0 0.0
      %809 = vmatmul.mubr.f32.gmra.mxu0 %v694
      %v810 = vpop.f32.mrf.mxu0
      %v811 = vadd.f32 %v617, %v810
      %v812 = vpop.f32.mrf.mxu0
      %v813 = vadd.f32 %v617, %v812
      %814 = vmatprep.mubr.f32.mxu0 0.0
      %815 = vmatmul.mubr.f32.gmra.mxu0 %v697
      %v816 = vpop.f32.mrf.mxu0
      %v817 = vadd.f32 %v622, %v816
      %v818 = vpop.f32.mrf.mxu0
      %v819 = vadd.f32 %v622, %v818
      %820 = vmatprep.mubr.f32.mxu0 0.0
      %821 = vmatmul.mubr.f32.gmra.mxu0 %v700
      %v822 = vpop.f32.mrf.mxu0
      %v823 = vadd.f32 %v627, %v822
      %v824 = vpop.f32.mrf.mxu0
      %v825 = vadd.f32 %v627, %v824
      %826 = vmatprep.mubr.f32.mxu0 0.0
      %827 = vmatmul.mubr.f32.gmra.mxu0 %v703
      %v828 = vpop.f32.mrf.mxu0
      %v829 = vadd.f32 %v632, %v828
      %v830 = vpop.f32.mrf.mxu0
      %v831 = vadd.f32 %v632, %v830
      %832 = vmatprep.mubr.f32.mxu0 0.0
      %833 = vmatmul.mubr.f32.gmra.mxu0 %v706
      %v834 = vpop.f32.mrf.mxu0
      %v835 = vadd.f32 %v637, %v834
      %v836 = vpop.f32.mrf.mxu0
      %v837 = vadd.f32 %v637, %v836
      %838 = vmatprep.mubr.f32.mxu0 0.0
      %839 = vmatmul.mubr.f32.gmra.mxu0 %v709
      %v840 = vpop.f32.mrf.mxu0
      %v841 = vadd.f32 %v642, %v840
      %v842 = vpop.f32.mrf.mxu0
      %v843 = vadd.f32 %v642, %v842
      %844 = vmatprep.mubr.f32.mxu0 0.0
      %845 = vmatmul.mubr.f32.gmra.mxu0 %v712
      %v846 = vpop.f32.mrf.mxu0
      %v847 = vadd.f32 %v647, %v846
      %v848 = vpop.f32.mrf.mxu0
      %v849 = vadd.f32 %v647, %v848
      %850 = vmatprep.mubr.f32.mxu0 0.0
      %851 = vmatmul.mubr.f32.gmra.mxu0 %v715
      %v852 = vpop.f32.mrf.mxu0
      %v853 = vadd.f32 %v652, %v852
      %v854 = vpop.f32.mrf.mxu0
      %v855 = vadd.f32 %v652, %v854
      %856 = vmatprep.mubr.f32.mxu0 0.0
      %857 = vmatmul.mubr.f32.gmra.mxu0 %v718
      %v858 = vpop.f32.mrf.mxu0
      %v859 = vadd.f32 %v657, %v858
      %v860 = vpop.f32.mrf.mxu0
      %v861 = vadd.f32 %v657, %v860
      %862 = vmatprep.mubr.f32.mxu0 0.0
      %863 = vmatmul.mubr.f32.gmra.mxu0 %v721
      %v864 = vpop.f32.mrf.mxu0
      %v865 = vadd.f32 %v662, %v864
      %v866 = vpop.f32.mrf.mxu0
      %v867 = vadd.f32 %v662, %v866
      %868 = vmatprep.mubr.f32.mxu0 0.0
      %869 = vmatmul.mubr.f32.gmra.mxu0 %v724
      %v870 = vpop.f32.mrf.mxu0
      %v871 = vadd.f32 %v667, %v870
      %v872 = vpop.f32.mrf.mxu0
      %v873 = vadd.f32 %v667, %v872
      %874 = vmatprep.mubr.f32.mxu0 0.0
      %875 = vmatmul.mubr.f32.gmra.mxu0 %v727
      %v876 = vpop.f32.mrf.mxu0
      %v877 = vadd.f32 %v672, %v876
      %v878 = vpop.f32.mrf.mxu0
      %v879 = vadd.f32 %v672, %v878
      %880 = vmatprep.mubr.f32.mxu0 0.0
      %881 = vmatmul.mubr.f32.gmra.mxu0 %v730
      %v882 = vpop.f32.mrf.mxu0
      %v883 = vadd.f32 %v677, %v882
      %v884 = vpop.f32.mrf.mxu0
      %v885 = vadd.f32 %v677, %v884
      %886 = vmatprep.mubr.f32.mxu0 0.0
      %887 = vmatmul.mubr.f32.gmra.mxu0 %v733
      %v888 = vpop.f32.mrf.mxu0
      %v889 = vadd.f32 %v682, %v888
      %v890 = vpop.f32.mrf.mxu0
      %v891 = vadd.f32 %v682, %v890
      %892 = vmatprep.mubr.f32.mxu0 0.0
      %893 = vmatmul.mubr.f32.gmra.mxu0 %v736
      %v894 = vpop.f32.mrf.mxu0
      %v895 = vadd.f32 %v687, %v894
      %v896 = vpop.f32.mrf.mxu0
      %v897 = vadd.f32 %v687, %v896
      %898 = vdwg.mxu0
      %v899 = vld [vmem:[%s305] sm:$0xff]
      %v900 = vld [vmem:[%s305 + $0x8] sm:$0xff]
      %v901 = vld [vmem:[%s305 + $0x10] sm:$0xff]
      %v902 = vld [vmem:[%s305 + $0x18] sm:$0xff]
      %v903 = vld [vmem:[%s305 + $0x20] sm:$0xff]
      %v904 = vld [vmem:[%s305 + $0x28] sm:$0xff]
      %v905 = vld [vmem:[%s305 + $0x30] sm:$0xff]
      %v906 = vld [vmem:[%s305 + $0x38] sm:$0xff]
      %v907 = vld [vmem:[%s305 + $0x40] sm:$0xff]
      %v908 = vld [vmem:[%s305 + $0x48] sm:$0xff]
      %v909 = vld [vmem:[%s305 + $0x50] sm:$0xff]
      %v910 = vld [vmem:[%s305 + $0x58] sm:$0xff]
      %v911 = vld [vmem:[%s305 + $0x60] sm:$0xff]
      %v912 = vld [vmem:[%s305 + $0x68] sm:$0xff]
      %v913 = vld [vmem:[%s305 + $0x70] sm:$0xff]
      %v914 = vld [vmem:[%s305 + $0x78] sm:$0xff]
      %v915 = vadd.f32 %v805, 1.0
      %v916 = vadd.f32 %v807, 1.0
      %v917 = vadd.f32 %v811, 1.0
      %v918 = vadd.f32 %v813, 1.0
      %v919 = vadd.f32 %v817, 1.0
      %v920 = vadd.f32 %v819, 1.0
      %v921 = vadd.f32 %v823, 1.0
      %v922 = vadd.f32 %v825, 1.0
      %v923 = vadd.f32 %v829, 1.0
      %v924 = vadd.f32 %v831, 1.0
      %v925 = vadd.f32 %v835, 1.0
      %v926 = vadd.f32 %v837, 1.0
      %v927 = vadd.f32 %v841, 1.0
      %v928 = vadd.f32 %v843, 1.0
      %v929 = vadd.f32 %v847, 1.0
      %v930 = vadd.f32 %v849, 1.0
      %v931 = vmul.f32 %v899, %v915
      %v932 = vmul.f32 %v900, %v916
      %v933 = vmul.f32 %v901, %v917
      %v934 = vmul.f32 %v902, %v918
      %v935 = vmul.f32 %v903, %v919
      %v936 = vmul.f32 %v904, %v920
      %v937 = vmul.f32 %v905, %v921
      %v938 = vmul.f32 %v906, %v922
      %v939 = vmul.f32 %v907, %v923
      %v940 = vmul.f32 %v908, %v924
      %v941 = vmul.f32 %v909, %v925
      %v942 = vmul.f32 %v910, %v926
      %v943 = vmul.f32 %v911, %v927
      %v944 = vmul.f32 %v912, %v928
      %v945 = vmul.f32 %v913, %v929
      %v946 = vmul.f32 %v914, %v930
      %v947 = vadd.f32 %v931, %v853
      %v948 = vadd.f32 %v932, %v855
      %v949 = vadd.f32 %v933, %v859
      %v950 = vadd.f32 %v934, %v861
      %v951 = vadd.f32 %v935, %v865
      %v952 = vadd.f32 %v936, %v867
      %v953 = vadd.f32 %v937, %v871
      %v954 = vadd.f32 %v938, %v873
      %v955 = vadd.f32 %v939, %v877
      %v956 = vadd.f32 %v940, %v879
      %v957 = vadd.f32 %v941, %v883
      %v958 = vadd.f32 %v942, %v885
      %v959 = vadd.f32 %v943, %v889
      %v960 = vadd.f32 %v944, %v891
      %v961 = vadd.f32 %v945, %v895
      %v962 = vadd.f32 %v946, %v897
      %963 = vst [vmem:[%s325] sm:$0xff] %v947
      %964 = vst [vmem:[%s325 + $0x8] sm:$0xff] %v948
      %965 = vst [vmem:[%s325 + $0x10] sm:$0xff] %v949
      %966 = vst [vmem:[%s325 + $0x18] sm:$0xff] %v950
      %967 = vst [vmem:[%s325 + $0x20] sm:$0xff] %v951
      %968 = vst [vmem:[%s325 + $0x28] sm:$0xff] %v952
      %969 = vst [vmem:[%s325 + $0x30] sm:$0xff] %v953
      %970 = vst [vmem:[%s325 + $0x38] sm:$0xff] %v954
      %971 = vst [vmem:[%s325 + $0x40] sm:$0xff] %v955
      %972 = vst [vmem:[%s325 + $0x48] sm:$0xff] %v956
      %973 = vst [vmem:[%s325 + $0x50] sm:$0xff] %v957
      %974 = vst [vmem:[%s325 + $0x58] sm:$0xff] %v958
      %975 = vst [vmem:[%s325 + $0x60] sm:$0xff] %v959
      %976 = vst [vmem:[%s325 + $0x68] sm:$0xff] %v960
      %977 = vst [vmem:[%s325 + $0x70] sm:$0xff] %v961
      %978 = vst [vmem:[%s325 + $0x78] sm:$0xff] %v962
      %s979 = smul.u32 2, %s22
      %p980 = scmp.lt.s32.totalorder %s21, 1
      %s981 = scalar_select %p980, %s21, 1
      %p982 = scmp.lt.s32.totalorder %s979, 1
      %s983 = scalar_select %p982, %s979, 1
      %s984 = smul.addr %s981, 16
      %s985 = sadd.s32 %s983, %s984
      %s986 = smul.addr %s985, 8
      %s987 = scalar_lea.vmem %s6, %s986
      // Predicated region
      $region45: #{sft_layer.1} parent=43 // pred_check
        %p988 = pneg %p189
      $region46: #{sft_layer.1} parent=43 // pred_check_branch
        %990 = sbr.rel (%p988) target = $region48
      $region47: #{sft_layer.1} parent=43 // pred_region
        %s991 = smul.u32 2, %s22
      $region48: #{sft_layer.1} parent=43 // pred_fallthru
        _
    $region44: #{sft_layer.1} parent=5 // pred_fallthru
      _
    %p992 = scmp.le.s32.totalorder 2, %s12
    // Predicated region
    $region49: #{sft_layer.1} parent=5 // pred_check
      %p993 = pneg %p992
    $region50: #{sft_layer.1} parent=5 // pred_check_branch
      %995 = sbr.rel (%p993) target = $region52
    $region51: #{sft_layer.1} parent=5 // pred_region
      %s996 = ssub.s32 %s12, 2
      // Predicated region
      $region53: #{sft_layer.1} parent=51 // pred_check
        %p997 = pneg %p195
      $region54: #{sft_layer.1} parent=51 // pred_check_branch
        %999 = sbr.rel (%p997) target = $region56
      $region55: #{sft_layer.1} parent=51 // pred_region
        %s1000 = smul.u32 2, %s24
        %p1001 = scmp.lt.s32.totalorder %s23, 1
        %s1002 = scalar_select %p1001, %s23, 1
        %p1003 = scmp.lt.s32.totalorder %s1000, 1
        %s1004 = scalar_select %p1003, %s1000, 1
        %s1005 = smul.addr %s1002, 16
        %s1006 = sadd.s32 %s1004, %s1005
        %s1007 = smul.addr %s1006, 8
        %s1008 = scalar_lea.vmem %s6, %s1007
      $region56: #{sft_layer.1} parent=51 // pred_fallthru
        _
    $region52: #{sft_layer.1} parent=5 // pred_fallthru
      _
  $region6: #{sft_layer.1} parent=0 // loop_footer
    %s16 = sadd.s32 1, %s12
  $region7: #{sft_layer.1} parent=0 // loop_footer_branch
    %11 = sbr.rel target = $region3
  $region8: #{sft_layer.1} parent=0 // loop_exit
    _

</llo_original>
